<compile_context>
chip_gen: v6e
topology: v6e:2x2x1
jax: 0.10.0
libtpu: 0.0.40
codegen_flags: <defaults>
</compile_context>

<pallas_src>
import functools

import jax
import jax.numpy as jnp
from jax import lax
from jax.experimental import pallas as pl
from jax.experimental.pallas import tpu as pltpu

_EPS = 1e-6
_LANES = 128


def _masked_partials_jnp(prediction, gt):
    """Plain-JAX (sum, count) partials of the masked squared log error."""
    pred = jnp.maximum(prediction.astype(jnp.float32), 0.0)
    g = gt.astype(jnp.float32)
    err = jnp.log(pred + _EPS) - jnp.log(g + _EPS)
    mask = g > 0.0
    s = jnp.sum(jnp.where(mask, err * err, 0.0))
    c = jnp.sum(mask.astype(jnp.float32))
    return s, c


def _mse_log_kernel(pred_ref, gt_ref, sum_ref, cnt_ref, *,
                    rows, block_rows, steps):
    c = pl.program_id(0)          # core slice (v7x) / singleton elsewhere
    i = pl.program_id(1)          # reduction step within the slice

    # Zero this slice's resident accumulators on its first reduction step.
    @pl.when(i == 0)
    def _():
        sum_ref[...] = jnp.zeros_like(sum_ref)
        cnt_ref[...] = jnp.zeros_like(cnt_ref)

    logical_block = c * steps + i          # un-clamped block id
    base_row = logical_block * block_rows

    pred = jnp.maximum(pred_ref[...].astype(jnp.float32), 0.0)   # clamp(min=0)
    gt = gt_ref[...].astype(jnp.float32)

    # Fused log-ratio: one EUP log per element instead of two.  Differs from
    # log(a)-log(b) by a few ULPs only.
    err = jnp.log((pred + _EPS) / (gt + _EPS))
    sq = err * err

    def accumulate(mask):
        # jnp.where select (NOT multiply-by-mask): NaN-safe for garbage/invalid
        # elements, which are simply dropped.
        s = jnp.where(mask, sq, 0.0)
        o = jnp.where(mask, 1.0, 0.0)
        if block_rows % 8 == 0:
            # Sublane fold into the resident (8,128) accumulator: pure VPU
            # vreg adds, no per-step cross-lane XLU reduce.
            sum_ref[...] += s.reshape(block_rows // 8, 8, _LANES).sum(axis=0)
            cnt_ref[...] += o.reshape(block_rows // 8, 8, _LANES).sum(axis=0)
        else:
            # Rare: a single full-extent block with a row count that is not a
            # multiple of 8 (tiny input) -> one sublane reduce into row 0.
            sum_ref[0:1, :] = sum_ref[0:1, :] + s.sum(axis=0, keepdims=True)
            cnt_ref[0:1, :] = cnt_ref[0:1, :] + o.sum(axis=0, keepdims=True)

    full_block = base_row + block_rows <= rows

    @pl.when(full_block)
    def _():
        # Hot path (interior blocks): no row-index mask needed; zero padding
        # in gt is already removed by the gt>0 test.
        accumulate(gt > 0.0)

    @pl.when(jnp.logical_not(full_block))
    def _():
        # Last (possibly partial) block and clamped overhang duplicates:
        # mask on the un-clamped global row index so out-of-bounds garbage
        # never contributes to sum or count.
        row_idx = lax.broadcasted_iota(jnp.int32, (block_rows, _LANES), 0) + base_row
        accumulate((row_idx < rows) & (gt > 0.0))


def _num_core_slices():
    # v7x has 2 TensorCores per chip -> split the reduction with CORE_PARALLEL.
    # Single-TC parts (v5e/v6e) keep a size-1 axis (no overhang waste).
    try:
        kind = jax.devices()[0].device_kind.lower()
    except Exception:
        return 1
    return 2 if "v7" in kind else 1


def mse_log_loss(prediction, gt, *, block_rows=4096, fast_path_elems=256 * 1024):
    """Masked mean of squared log-error via a Pallas TPU streaming reduction."""
    pred_flat = jnp.ravel(prediction)      # row-major flatten: free reshape
    gt_flat = jnp.ravel(gt)
    total = pred_flat.shape[0]

    # Small-input fast path: fixed pallas_call launch overhead dominates for
    # tiny loss tensors; let XLA fuse it.  (0/0 -> NaN for empty, like torch.)
    if total < max(fast_path_elems, _LANES):
        s, c = _masked_partials_jnp(pred_flat, gt_flat)
        return (s / c).astype(jnp.float32)

    # Lane alignment only: any total that is a multiple of 128 is fed zero-copy.
    # Lane-unaligned totals pay a pad of < 128 elements (a copy is unavoidable
    # to present a lane-dense 2-D slab); gt pads with 0 -> masked out.
    rem = total % _LANES
    if rem:
        pad = _LANES - rem
        pred_flat = jnp.pad(pred_flat, (0, pad))
        gt_flat = jnp.pad(gt_flat, (0, pad))
        total_padded = total + pad
    else:
        total_padded = total
    rows = total_padded // _LANES
    pred2d = pred_flat.reshape(rows, _LANES)
    gt2d = gt_flat.reshape(rows, _LANES)

    # Block sizing: 4096 rows = 2 MiB per f32 input per step (double-buffered
    # inputs ~8 MiB).  If the whole slab fits in one block, use the full row
    # extent (always a legal BlockSpec); otherwise keep block_rows a multiple
    # of 32 so f32 / bf16 / int8 tiling constraints are all satisfied.
    if rows <= block_rows:
        block_rows = rows
    else:
        block_rows = max(32, (block_rows // 32) * 32)

    nblocks = -(-rows // block_rows)
    num_slices = min(_num_core_slices(), nblocks)
    steps = -(-nblocks // num_slices)

    def in_index_map(c, i):
        # Clamp so an overhang step (odd nblocks on the 2-core split) re-reads
        # an in-bounds block; the kernel masks it via the un-clamped block id.
        return (jnp.minimum(c * steps + i, nblocks - 1), 0)

    kernel = functools.partial(
        _mse_log_kernel, rows=rows, block_rows=block_rows, steps=steps)

    if num_slices > 1:
        dim_sem = (pltpu.CORE_PARALLEL, pltpu.ARBITRARY)   # real 2-TC split (v7x)
    else:
        dim_sem = ("arbitrary", "arbitrary")

    sum_parts, cnt_parts = pl.pallas_call(
        kernel,
        out_shape=(
            jax.ShapeDtypeStruct((num_slices * 8, _LANES), jnp.float32),
            jax.ShapeDtypeStruct((num_slices * 8, _LANES), jnp.float32),
        ),
        grid_spec=pltpu.PrefetchScalarGridSpec(
            num_scalar_prefetch=0,
            grid=(num_slices, steps),
            in_specs=[
                pl.BlockSpec((block_rows, _LANES), in_index_map),
                pl.BlockSpec((block_rows, _LANES), in_index_map),
            ],
            out_specs=(
                pl.BlockSpec((8, _LANES), lambda c, i: (c, 0)),
                pl.BlockSpec((8, _LANES), lambda c, i: (c, 0)),
            ),
        ),
        compiler_params=pltpu.CompilerParams(
            dimension_semantics=dim_sem,
            vmem_limit_bytes=32 * 1024 * 1024,
        ),
    )(pred2d, gt2d)

    # Tiny final reduce (<= 2 x (8,128) elements) + masked mean.
    # 0/0 -> NaN when there are no valid pixels, matching torch.mean of empty.
    return (jnp.sum(sum_parts) / jnp.sum(cnt_parts)).astype(jnp.float32)


if __name__ == "__main__":
    key = jax.random.PRNGKey(0)

    def reference(prediction, gt):
        pred = jnp.maximum(prediction.astype(jnp.float32), 0.0)
        g = gt.astype(jnp.float32)
        err = jnp.log(pred + _EPS) - jnp.log(g + _EPS)
        mask = g > 0.0
        return (jnp.sum(jnp.where(mask, err * err, 0.0))
                / jnp.sum(mask.astype(jnp.float32)))

    def make_inputs(k, shape):
        k1, k2 = jax.random.split(k)
        prediction = jax.random.normal(k1, shape, dtype=jnp.float32) + 0.5
        # gt: mix of positive "depths" and zeros (invalid) -> exercises the mask.
        gt_raw = jax.random.uniform(k2, shape, dtype=jnp.float32,
                                    minval=-0.5, maxval=2.0)
        gt = jnp.where(gt_raw > 0.0, gt_raw, 0.0)
        return prediction, gt

    # fast_path_elems=0 forces the Pallas path so the kernel is exercised at
    # small test shapes; the last case uses the default (plain-XLA fast path).
    cases = [
        ("aligned_single_block",   (2, 4, 16, 16),  dict(fast_path_elems=0)),
        ("odd_rows_single_block",  (2, 4, 16, 17),  dict(fast_path_elems=0)),
        ("multi_block_partial",    (2, 4, 65, 129), dict(fast_path_elems=0,
                                                         block_rows=128)),
        ("small_fast_path",        (2, 4, 16, 16),  dict()),
    ]

    keys = jax.random.split(key, len(cases))
    for (name, shape, kwargs), k in zip(cases, keys):
        prediction, gt = make_inputs(k, shape)
        loss = mse_log_loss(prediction, gt, **kwargs)
        jax.block_until_ready(loss)
        ref = reference(prediction, gt)
        assert jnp.allclose(loss, ref, rtol=1e-4, atol=1e-6), (name, loss, ref)

    print("KERNEL_OK")
</pallas_src>

<mosaic_0001>
module attributes {stable_mosaic.version = 11 : i64} {
  func.func @_mse_log_kernel(%arg0: i32, %arg1: i32, %arg2: memref<16x128xf32, #tpu.memory_space<vmem>>, %arg3: memref<16x128xf32, #tpu.memory_space<vmem>>, %arg4: memref<8x128xf32, #tpu.memory_space<vmem>>, %arg5: memref<8x128xf32, #tpu.memory_space<vmem>>) attributes {dimension_semantics = [#tpu.dimension_semantics<arbitrary>, #tpu.dimension_semantics<arbitrary>], iteration_bounds = array<i64: 1, 1>, scalar_prefetch = 0 : i64, scratch_operands = 0 : i64, tpu.core_type = #tpu.core_type<tc>, window_params = [{transform_indices = @transform_0, window_bounds = array<i64: 16, 128>}, {transform_indices = @transform_1, window_bounds = array<i64: 16, 128>}, {transform_indices = @transform_2, window_bounds = array<i64: 8, 128>}, {transform_indices = @transform_3, window_bounds = array<i64: 8, 128>}]} {
    %c0_i32 = arith.constant 0 : i32
    %0 = arith.cmpi eq, %arg1, %c0_i32 : i32
    %1 = arith.extui %0 : i1 to i32
    %c0_i32_0 = arith.constant 0 : i32
    %2 = arith.cmpi ne, %1, %c0_i32_0 : i32
    scf.if %2 {
      %cst_10 = arith.constant 0.000000e+00 : f32
      %24 = vector.broadcast %cst_10 : f32 to vector<8x128xf32>
      %c0_11 = arith.constant 0 : index
      %c0_12 = arith.constant 0 : index
      %25 = vector.load %arg4[%c0_11, %c0_12] : memref<8x128xf32, #tpu.memory_space<vmem>>, vector<8x128xf32>
      tpu.vector_store %arg4[%c0_11, %c0_12], %24 {strides = array<i32>} : memref<8x128xf32, #tpu.memory_space<vmem>>, vector<8x128xf32>,
      %cst_13 = arith.constant 0.000000e+00 : f32
      %26 = vector.broadcast %cst_13 : f32 to vector<8x128xf32>
      %c0_14 = arith.constant 0 : index
      %c0_15 = arith.constant 0 : index
      %27 = vector.load %arg5[%c0_14, %c0_15] : memref<8x128xf32, #tpu.memory_space<vmem>>, vector<8x128xf32>
      tpu.vector_store %arg5[%c0_14, %c0_15], %26 {strides = array<i32>} : memref<8x128xf32, #tpu.memory_space<vmem>>, vector<8x128xf32>,
    } else {
    }
    %c1_i32 = arith.constant 1 : i32
    %3 = arith.muli %arg0, %c1_i32 : i32
    %4 = arith.addi %3, %arg1 : i32
    %c16_i32 = arith.constant 16 : i32
    %5 = arith.muli %4, %c16_i32 : i32
    %c0 = arith.constant 0 : index
    %c0_1 = arith.constant 0 : index
    %6 = vector.load %arg2[%c0, %c0_1] : memref<16x128xf32, #tpu.memory_space<vmem>>, vector<16x128xf32>
    %cst = arith.constant 0.000000e+00 : f32
    %7 = vector.broadcast %cst : f32 to vector<16x128xf32>
    %8 = arith.maximumf %6, %7 : vector<16x128xf32>
    %c0_2 = arith.constant 0 : index
    %c0_3 = arith.constant 0 : index
    %9 = vector.load %arg3[%c0_2, %c0_3] : memref<16x128xf32, #tpu.memory_space<vmem>>, vector<16x128xf32>
    %cst_4 = arith.constant 9.99999997E-7 : f32
    %10 = vector.broadcast %cst_4 : f32 to vector<16x128xf32>
    %11 = arith.addf %8, %10 : vector<16x128xf32>
    %cst_5 = arith.constant 9.99999997E-7 : f32
    %12 = vector.broadcast %cst_5 : f32 to vector<16x128xf32>
    %13 = arith.addf %9, %12 : vector<16x128xf32>
    %14 = arith.divf %11, %13 : vector<16x128xf32>
    %15 = math.log %14 : vector<16x128xf32>
    %16 = arith.mulf %15, %15 : vector<16x128xf32>
    %c16_i32_6 = arith.constant 16 : i32
    %17 = arith.addi %5, %c16_i32_6 : i32
    %c16_i32_7 = arith.constant 16 : i32
    %18 = arith.cmpi sle, %17, %c16_i32_7 : i32
    %19 = arith.extui %18 : i1 to i32
    %c0_i32_8 = arith.constant 0 : i32
    %20 = arith.cmpi ne, %19, %c0_i32_8 : i32
    scf.if %20 {
      %cst_10 = arith.constant 0.000000e+00 : f32
      %24 = vector.broadcast %cst_10 : f32 to vector<16x128xf32>
      %25 = arith.cmpf ogt, %9, %24 : vector<16x128xf32>
      %cst_11 = arith.constant 0.000000e+00 : f32
      %26 = vector.broadcast %cst_11 : f32 to vector<16x128xf32>
      %27 = arith.select %25, %16, %26 : vector<16x128xi1>, vector<16x128xf32>
      %cst_12 = arith.constant 1.000000e+00 : f32
      %cst_13 = arith.constant 0.000000e+00 : f32
      %28 = vector.broadcast %cst_12 : f32 to vector<16x128xf32>
      %29 = vector.broadcast %cst_13 : f32 to vector<16x128xf32>
      %30 = arith.select %25, %28, %29 : vector<16x128xi1>, vector<16x128xf32>
      %c0_14 = arith.constant 0 : index
      %c0_15 = arith.constant 0 : index
      %31 = vector.load %arg4[%c0_14, %c0_15] : memref<8x128xf32, #tpu.memory_space<vmem>>, vector<8x128xf32>
      %32 = vector.shape_cast %27 : vector<16x128xf32> to vector<2x8x128xf32>
      %cst_16 = arith.constant dense<0.000000e+00> : vector<8x128xf32>
      %33 = vector.multi_reduction <add>, %32, %cst_16 [0] : vector<2x8x128xf32> to vector<8x128xf32>
      %34 = arith.addf %31, %33 : vector<8x128xf32>
      %c0_17 = arith.constant 0 : index
      %c0_18 = arith.constant 0 : index
      %35 = vector.load %arg4[%c0_17, %c0_18] : memref<8x128xf32, #tpu.memory_space<vmem>>, vector<8x128xf32>
      tpu.vector_store %arg4[%c0_17, %c0_18], %34 {strides = array<i32>} : memref<8x128xf32, #tpu.memory_space<vmem>>, vector<8x128xf32>,
      %c0_19 = arith.constant 0 : index
      %c0_20 = arith.constant 0 : index
      %36 = vector.load %arg5[%c0_19, %c0_20] : memref<8x128xf32, #tpu.memory_space<vmem>>, vector<8x128xf32>
      %37 = vector.shape_cast %30 : vector<16x128xf32> to vector<2x8x128xf32>
      %cst_21 = arith.constant dense<0.000000e+00> : vector<8x128xf32>
      %38 = vector.multi_reduction <add>, %37, %cst_21 [0] : vector<2x8x128xf32> to vector<8x128xf32>
      %39 = arith.addf %36, %38 : vector<8x128xf32>
      %c0_22 = arith.constant 0 : index
      %c0_23 = arith.constant 0 : index
      %40 = vector.load %arg5[%c0_22, %c0_23] : memref<8x128xf32, #tpu.memory_space<vmem>>, vector<8x128xf32>
      tpu.vector_store %arg5[%c0_22, %c0_23], %39 {strides = array<i32>} : memref<8x128xf32, #tpu.memory_space<vmem>>, vector<8x128xf32>,
    } else {
    }
    %true = arith.constant true
    %21 = arith.xori %18, %true : i1
    %22 = arith.extui %21 : i1 to i32
    %c0_i32_9 = arith.constant 0 : i32
    %23 = arith.cmpi ne, %22, %c0_i32_9 : i32
    scf.if %23 {
      %24 = tpu.iota {dimensions = array<i32: 0>} : vector<16x128xi32>
      %25 = vector.broadcast %5 : i32 to vector<16x128xi32>
      %26 = arith.addi %24, %25 : vector<16x128xi32>
      %c16_i32_10 = arith.constant 16 : i32
      %27 = vector.broadcast %c16_i32_10 : i32 to vector<16x128xi32>
      %28 = arith.cmpi slt, %26, %27 : vector<16x128xi32>
      %cst_11 = arith.constant 0.000000e+00 : f32
      %29 = vector.broadcast %cst_11 : f32 to vector<16x128xf32>
      %30 = arith.cmpf ogt, %9, %29 : vector<16x128xf32>
      %31 = arith.andi %28, %30 : vector<16x128xi1>
      %cst_12 = arith.constant 0.000000e+00 : f32
      %32 = vector.broadcast %cst_12 : f32 to vector<16x128xf32>
      %33 = arith.select %31, %16, %32 : vector<16x128xi1>, vector<16x128xf32>
      %cst_13 = arith.constant 1.000000e+00 : f32
      %cst_14 = arith.constant 0.000000e+00 : f32
      %34 = vector.broadcast %cst_13 : f32 to vector<16x128xf32>
      %35 = vector.broadcast %cst_14 : f32 to vector<16x128xf32>
      %36 = arith.select %31, %34, %35 : vector<16x128xi1>, vector<16x128xf32>
      %c0_15 = arith.constant 0 : index
      %c0_16 = arith.constant 0 : index
      %37 = vector.load %arg4[%c0_15, %c0_16] : memref<8x128xf32, #tpu.memory_space<vmem>>, vector<8x128xf32>
      %38 = vector.shape_cast %33 : vector<16x128xf32> to vector<2x8x128xf32>
      %cst_17 = arith.constant dense<0.000000e+00> : vector<8x128xf32>
      %39 = vector.multi_reduction <add>, %38, %cst_17 [0] : vector<2x8x128xf32> to vector<8x128xf32>
      %40 = arith.addf %37, %39 : vector<8x128xf32>
      %c0_18 = arith.constant 0 : index
      %c0_19 = arith.constant 0 : index
      %41 = vector.load %arg4[%c0_18, %c0_19] : memref<8x128xf32, #tpu.memory_space<vmem>>, vector<8x128xf32>
      tpu.vector_store %arg4[%c0_18, %c0_19], %40 {strides = array<i32>} : memref<8x128xf32, #tpu.memory_space<vmem>>, vector<8x128xf32>,
      %c0_20 = arith.constant 0 : index
      %c0_21 = arith.constant 0 : index
      %42 = vector.load %arg5[%c0_20, %c0_21] : memref<8x128xf32, #tpu.memory_space<vmem>>, vector<8x128xf32>
      %43 = vector.shape_cast %36 : vector<16x128xf32> to vector<2x8x128xf32>
      %cst_22 = arith.constant dense<0.000000e+00> : vector<8x128xf32>
      %44 = vector.multi_reduction <add>, %43, %cst_22 [0] : vector<2x8x128xf32> to vector<8x128xf32>
      %45 = arith.addf %42, %44 : vector<8x128xf32>
      %c0_23 = arith.constant 0 : index
      %c0_24 = arith.constant 0 : index
      %46 = vector.load %arg5[%c0_23, %c0_24] : memref<8x128xf32, #tpu.memory_space<vmem>>, vector<8x128xf32>
      tpu.vector_store %arg5[%c0_23, %c0_24], %45 {strides = array<i32>} : memref<8x128xf32, #tpu.memory_space<vmem>>, vector<8x128xf32>,
    } else {
    }
    return
  }
  func.func @transform_0(%arg0: i32, %arg1: i32) -> (i32, i32) {
    %c1_i32 = arith.constant 1 : i32
    %0 = arith.muli %arg0, %c1_i32 : i32
    %1 = arith.addi %0, %arg1 : i32
    %c0_i32 = arith.constant 0 : i32
    %2 = arith.minsi %1, %c0_i32 : i32
    %c0_i32_0 = arith.constant 0 : i32
    %c0_i32_1 = arith.constant 0 : i32
    return %2, %c0_i32_0 : i32, i32
  }
  func.func @transform_1(%arg0: i32, %arg1: i32) -> (i32, i32) {
    %c1_i32 = arith.constant 1 : i32
    %0 = arith.muli %arg0, %c1_i32 : i32
    %1 = arith.addi %0, %arg1 : i32
    %c0_i32 = arith.constant 0 : i32
    %2 = arith.minsi %1, %c0_i32 : i32
    %c0_i32_0 = arith.constant 0 : i32
    %c0_i32_1 = arith.constant 0 : i32
    return %2, %c0_i32_0 : i32, i32
  }
  func.func @transform_2(%arg0: i32, %arg1: i32) -> (i32, i32) {
    %c0_i32 = arith.constant 0 : i32
    %c0_i32_0 = arith.constant 0 : i32
    return %arg0, %c0_i32 : i32, i32
  }
  func.func @transform_3(%arg0: i32, %arg1: i32) -> (i32, i32) {
    %c0_i32 = arith.constant 0 : i32
    %c0_i32_0 = arith.constant 0 : i32
    return %arg0, %c0_i32 : i32, i32
  }
}

</mosaic_0001>

<llo_original>
// kernel: tpu_custom_call.1
$region0: #{tpu_custom_call.1}
  #allocation0 [shape = 'u32[]', space=smem, size = 0x4, offset = 0x4, fixed_abs, tag = 'smem constant byte address 0x4 - core index']
  #allocation1 [shape = 'u32[144,128]{1,0:T(1,128)}', space=vmem, size = 0x12000, scoped, tag = 'internal scratch']
  %s0 = inlined_call_operand.hbm [shape: f32[16,128], index: 0, kind: input, shape index: {}]
  %s1 = inlined_call_operand.hbm [shape: f32[16,128], index: 1, kind: input, shape index: {}]
  %s2 = inlined_call_operand.hbm [shape: f32[8,128], index: 2, kind: output, shape index: {0}]
  %s3 = inlined_call_operand.hbm [shape: f32[8,128], index: 3, kind: output, shape index: {1}]
  %4 = xla_tuple %s2, %s3
  %s5 = sld [smem:[#allocation0]]
  $region46: #{tpu_custom_call.1} parent=0
    _
  %s7 = ssub.s32 1, %s5
  %s8 = scalar_select 0, %s7, %s5
  $region1: #{tpu_custom_call.1} parent=0
    #allocation2 [shape = 'u8[8192]{0}', space=vmem, size = 0x2000, scoped, tag = 'input window, operand 0, single buffered']
    #allocation3 [shape = 's32[1]{0}', space=sflag, size = 0x4, scoped, tag = 'scoped memory for tpu_custom_call.1']
    #allocation4 [shape = 's32[1]{0}', space=sflag, size = 0x4, scoped, tag = 'scoped memory for tpu_custom_call.1']
    #allocation5 [shape = 'u8[8192]{0}', space=vmem, size = 0x2000, scoped, tag = 'input window, operand 1, single buffered']
    #allocation6 [shape = 's32[1]{0}', space=sflag, size = 0x4, scoped, tag = 'scoped memory for tpu_custom_call.1']
    #allocation7 [shape = 'u8[4096]{0}', space=vmem, size = 0x1000, scoped, tag = 'output window, operand 0, single buffered']
    #allocation8 [shape = 'u8[4096]{0}', space=vmem, size = 0x1000, scoped, tag = 'output window, operand 1, single buffered']
    #allocation9 [shape = 's32[1]{0}', space=sflag, size = 0x4, scoped, tag = 'scoped memory for tpu_custom_call.1']
    %9 = vsyncpa [#allocation3], 0
    %10 = vsyncpa [#allocation6], 0
    %11 = vsyncpa [#allocation4], 0
    %12 = vsyncpa [#allocation9], 0
    // Predicated region
    $region2: #{tpu_custom_call.1} parent=1 // pred_check
      _
    $region3: #{tpu_custom_call.1} parent=1 // pred_check_branch
      %14 = sbr.rel (0) target = $region5
    $region4: #{tpu_custom_call.1} parent=1 // pred_region
      %s15 = sadd.s32 0, 0
      %p16 = scmp.lt.s32.totalorder %s15, 0
      %s17 = scalar_select %p16, %s15, 0
      %s18 = smul.u32 2, %s17
      %s20 = ssub.s32 256, 256
      %21 = vsyncadd [#allocation3], %s20
      %s22 = smul.addr %s18, 128
      %s23 = scalar_lea.hbm %s0, %s22
      %s24 = sshll.u32 [#allocation2], 4
      %s25 = int_to_ptr.vmem [resolvable:$true] %s24
      %30 = dma.hbm_to_vmem [thread:$0]  %s23, 256, %s25, [#allocation3], 128, 128, 8
    $region5: #{tpu_custom_call.1} parent=1 // pred_fallthru
      _
    // Predicated region
    $region6: #{tpu_custom_call.1} parent=1 // pred_check
      _
    $region7: #{tpu_custom_call.1} parent=1 // pred_check_branch
      %32 = sbr.rel (0) target = $region9
    $region8: #{tpu_custom_call.1} parent=1 // pred_region
      %s33 = sadd.s32 0, 0
      %p34 = scmp.lt.s32.totalorder %s33, 0
      %s35 = scalar_select %p34, %s33, 0
      %s36 = smul.u32 2, %s35
      %s38 = ssub.s32 256, 256
      %39 = vsyncadd [#allocation6], %s38
      %s40 = smul.addr %s36, 128
      %s41 = scalar_lea.hbm %s1, %s40
      %s42 = sshll.u32 [#allocation5], 4
      %s43 = int_to_ptr.vmem [resolvable:$true] %s42
      %48 = dma.hbm_to_vmem [thread:$0]  %s41, 256, %s43, [#allocation6], 128, 128, 8
    $region9: #{tpu_custom_call.1} parent=1 // pred_fallthru
      _
    // Predicated region
    $region10: #{tpu_custom_call.1} parent=1 // pred_check
      _
    $region11: #{tpu_custom_call.1} parent=1 // pred_check_branch
      %50 = sbr.rel (0) target = $region13
    $region12: #{tpu_custom_call.1} parent=1 // pred_region
      %51 = dma.done [#allocation3], 256
    $region13: #{tpu_custom_call.1} parent=1 // pred_fallthru
      _
    // Predicated region
    $region14: #{tpu_custom_call.1} parent=1 // pred_check
      _
    $region15: #{tpu_custom_call.1} parent=1 // pred_check_branch
      %53 = sbr.rel (0) target = $region17
    $region16: #{tpu_custom_call.1} parent=1 // pred_region
      %54 = dma.done [#allocation6], 256
    $region17: #{tpu_custom_call.1} parent=1 // pred_fallthru
      _
    %s55 = sadd.s32 0, 0
    %p56 = scmp.lt.s32.totalorder %s55, 0
    %s57 = scalar_select %p56, %s55, 0
    %s58 = smul.u32 2, %s57
    %s59 = sadd.s32 0, 0
    %p60 = scmp.lt.s32.totalorder %s59, 0
    %s61 = scalar_select %p60, %s59, 0
    %s62 = smul.u32 2, %s61
    %p63 = scmp.eq.s32.totalorder 0, 0
    // Predicated region
    $region18: #{tpu_custom_call.1} parent=1 // pred_check
      %p64 = pneg %p63
    $region19: #{tpu_custom_call.1} parent=1 // pred_check_branch
      %66 = sbr.rel (%p64) target = $region21
    $region20: #{tpu_custom_call.1} parent=1 // pred_region
      %67 = vst [vmem:[#allocation7] sm:$0xff] 0.0
      %68 = vst [vmem:[#allocation8] sm:$0xff] 0.0
    $region21: #{tpu_custom_call.1} parent=1 // pred_fallthru
      _
    %s69 = sadd.s32 0, 0
    %s70 = smul.u32 %s69, 16
    %v71 = vld [vmem:[#allocation2] sm:$0xff]
    %v72 = vld [vmem:[#allocation2 + $0x8] sm:$0xff]
    %v73 = vmax.f32 %v71, 0.0
    %v74 = vmax.f32 %v72, 0.0
    %v75 = vld [vmem:[#allocation5] sm:$0xff]
    %v76 = vld [vmem:[#allocation5 + $0x8] sm:$0xff]
    %v77 = vadd.f32 %v73, 1e-06
    %v78 = vadd.f32 %v74, 1e-06
    %v79 = vadd.f32 %v75, 1e-06
    %v80 = vadd.f32 %v76, 1e-06
    %v81 = vrcp.pop %v79
    %v82 = vmul.f32 %v77, %v81
    %v83 = vrcp.pop %v80
    %v84 = vmul.f32 %v78, %v83
    %v85 = vlog2.pop %v82
    %v86 = vmul.f32 %v85, 0.6931472
    %v87 = vlog2.pop %v84
    %v88 = vmul.f32 %v87, 0.6931472
    %v89 = vmul.f32 %v86, %v86
    %v90 = vmul.f32 %v88, %v88
    %s91 = sadd.s32 %s70, 16
    %p92 = scmp.le.s32.totalorder %s91, 16
    // Predicated region
    $region22: #{tpu_custom_call.1} parent=1 // pred_check
      %p93 = pneg %p92
    $region23: #{tpu_custom_call.1} parent=1 // pred_check_branch
      %95 = sbr.rel (%p93) target = $region25
    $region24: #{tpu_custom_call.1} parent=1 // pred_region
      %vm96 = vcmp.gt.f32.partialorder %v75, 0.0
      %vm97 = vcmp.gt.f32.partialorder %v76, 0.0
      %v98 = vsel %vm96, %v89, 0.0
      %v99 = vsel %vm97, %v90, 0.0
      %v100 = vsel %vm96, 1.0, 0.0
      %v101 = vsel %vm97, 1.0, 0.0
      %v102 = vld [vmem:[#allocation7] sm:$0xff]
      %v103 = vadd.f32 %v98, %v99
      %v104 = vadd.f32 %v102, %v103
      %105 = vst [vmem:[#allocation7] sm:$0xff] %v104
      %v106 = vld [vmem:[#allocation8] sm:$0xff]
      %v107 = vadd.f32 %v100, %v101
      %v108 = vadd.f32 %v106, %v107
      %109 = vst [vmem:[#allocation8] sm:$0xff] %v108
    $region25: #{tpu_custom_call.1} parent=1 // pred_fallthru
      _
    %p110 = scmp.gt.s32.totalorder %s91, 16
    // Predicated region
    $region26: #{tpu_custom_call.1} parent=1 // pred_check
      %p111 = pneg %p110
    $region27: #{tpu_custom_call.1} parent=1 // pred_check_branch
      %113 = sbr.rel (%p111) target = $region29
    $region28: #{tpu_custom_call.1} parent=1 // pred_region
      %v114 = vlaneseq
      %v115 = vshrl.u32 %v114, 7
      %v116 = vadd.s32 %v115, 8
      %v117 = vstv %s70
      %v118 = vadd.s32 %v115, %v117
      %v119 = vadd.s32 %v116, %v117
      %vm120 = vcmp.lt.s32.totalorder %v118, 16
      %vm121 = vcmp.lt.s32.totalorder %v119, 16
      %vm122 = vcmp.gt.f32.partialorder %v75, 0.0
      %vm123 = vcmp.gt.f32.partialorder %v76, 0.0
      %vm124 = vmand %vm120, %vm122
      %vm125 = vmand %vm121, %vm123
      %v126 = vsel %vm124, %v89, 0.0
      %v127 = vsel %vm125, %v90, 0.0
      %v128 = vsel %vm124, 1.0, 0.0
      %v129 = vsel %vm125, 1.0, 0.0
      %v130 = vld [vmem:[#allocation7] sm:$0xff]
      %v131 = vadd.f32 %v126, %v127
      %v132 = vadd.f32 %v130, %v131
      %133 = vst [vmem:[#allocation7] sm:$0xff] %v132
      %v134 = vld [vmem:[#allocation8] sm:$0xff]
      %v135 = vadd.f32 %v128, %v129
      %v136 = vadd.f32 %v134, %v135
      %137 = vst [vmem:[#allocation8] sm:$0xff] %v136
    $region29: #{tpu_custom_call.1} parent=1 // pred_fallthru
      _
    // Predicated region
    $region30: #{tpu_custom_call.1} parent=1 // pred_check
      _
    $region31: #{tpu_custom_call.1} parent=1 // pred_check_branch
      %139 = sbr.rel (0) target = $region33
    $region32: #{tpu_custom_call.1} parent=1 // pred_region
      %s141 = ssub.s32 128, 128
      %142 = vsyncadd [#allocation4], %s141
      %s144 = sshll.u32 [#allocation7], 4
      %s145 = int_to_ptr.vmem [resolvable:$true] %s144
      %147 = dma.vmem_to_hbm [thread:$0]  %s145, 128, %s2, [#allocation4]
    $region33: #{tpu_custom_call.1} parent=1 // pred_fallthru
      _
    // Predicated region
    $region34: #{tpu_custom_call.1} parent=1 // pred_check
      _
    $region35: #{tpu_custom_call.1} parent=1 // pred_check_branch
      %149 = sbr.rel (0) target = $region37
    $region36: #{tpu_custom_call.1} parent=1 // pred_region
      %s151 = ssub.s32 128, 128
      %152 = vsyncadd [#allocation9], %s151
      %s154 = sshll.u32 [#allocation8], 4
      %s155 = int_to_ptr.vmem [resolvable:$true] %s154
      %157 = dma.vmem_to_hbm [thread:$0]  %s155, 128, %s3, [#allocation9]
    $region37: #{tpu_custom_call.1} parent=1 // pred_fallthru
      _
    // Predicated region
    $region38: #{tpu_custom_call.1} parent=1 // pred_check
      _
    $region39: #{tpu_custom_call.1} parent=1 // pred_check_branch
      %159 = sbr.rel (0) target = $region41
    $region40: #{tpu_custom_call.1} parent=1 // pred_region
      %160 = dma.done [#allocation4], 128
    $region41: #{tpu_custom_call.1} parent=1 // pred_fallthru
      _
    // Predicated region
    $region42: #{tpu_custom_call.1} parent=1 // pred_check
      _
    $region43: #{tpu_custom_call.1} parent=1 // pred_check_branch
      %162 = sbr.rel (0) target = $region45
    $region44: #{tpu_custom_call.1} parent=1 // pred_region
      %163 = dma.done [#allocation9], 128
    $region45: #{tpu_custom_call.1} parent=1 // pred_fallthru
      _
    %164 = vsyncpa [#allocation3], 1
    %165 = vsyncpa [#allocation6], 1
    %166 = vsyncpa [#allocation4], 1
    %167 = vsyncpa [#allocation9], 1

</llo_original>
